<compile_context>
chip_gen: v7x
topology: tpu7x:2x2x1
jax: 0.10.0
libtpu: 0.0.40
codegen_flags: <defaults>
</compile_context>

<pallas_src>
import functools

import jax
import jax.numpy as jnp
from jax.experimental import pallas as pl
from jax.experimental.pallas import tpu as pltpu


def _triplet_l2norm_kernel(a_ref, p_ref, n_ref, loss_ref, *,
                           margin, swap, eps, batch, block_rows):
    """One batch tile: interleaved (re, im) float32 blocks of shape (TB, 2D)."""
    two_d = a_ref.shape[-1]

    # Lanes hold interleaved (re, im) pairs.  pltpu.roll(x, 1, axis=1) brings each
    # lane one neighbour; the rolled-iota test below marks exactly the lanes whose
    # delivered neighbour is their re/im partner, independent of the rotate
    # direction convention (and of any padded-lane behaviour at the wrap lane).
    lane = jax.lax.broadcasted_iota(jnp.int32, (block_rows, two_d), 1)
    partner = pltpu.roll(lane, 1, axis=1) == (lane ^ 1)
    eps_vec = jnp.where(partner, jnp.float32(eps), jnp.float32(0.0))

    def l2_normalized_abs(ref):
        v = ref[...]                                    # (TB, 2D) float32
        sq = v * v                                      # re^2 / im^2 per lane
        pair = sq + pltpu.roll(sq, 1, axis=1)           # |x_k|^2 on `partner` lanes
        ab = jnp.where(partner, jnp.sqrt(pair), 0.0)    # per-element |x_k| (0 elsewhere)
        # sum(sq) over all 2D lanes == sum_k |x_k|^2 == ||abs(x)||_2^2
        inv_norm = jax.lax.rsqrt(jnp.sum(sq, axis=1, keepdims=True))
        return ab * inv_norm                            # normalized once, reused below

    def half_sq_dist(nx, ny):
        # F.pairwise_distance(p=2, eps=1e-6) ** 2 / 2  ==  0.5 * || nx - ny + eps ||^2
        d = nx - ny + eps_vec                           # eps only on real element lanes
        return 0.5 * jnp.sum(d * d, axis=1, keepdims=True)   # (TB, 1)

    a_n = l2_normalized_abs(a_ref)   # anchor normalized ONCE (used for both distances)
    p_n = l2_normalized_abs(p_ref)
    n_n = l2_normalized_abs(n_ref)

    dist_pos = half_sq_dist(a_n, p_n)
    dist_neg = half_sq_dist(a_n, n_n)
    if swap:
        dist_neg = jnp.minimum(dist_neg, half_sq_dist(p_n, n_n))

    loss = jnp.maximum(margin + dist_pos - dist_neg, 0.0)       # (TB, 1)

    # Zero rows past the true batch (ragged last tile) so wrapper-side sum/mean is exact.
    row = (pl.program_id(0) * block_rows
           + jax.lax.broadcasted_iota(jnp.int32, (block_rows, 1), 0))
    loss_ref[...] = jnp.where(row < batch, loss, 0.0)


def _interleaved_f32(x):
    """complex64 [B, D] -> float32 [B, 2D] with interleaved (re, im) lanes."""
    x = jnp.asarray(x)
    if x.dtype != jnp.complex64:
        x = x.astype(jnp.complex64)
    b, d = x.shape
    try:
        # Zero-copy reinterpretation of the complex buffer when supported.
        planes = jax.lax.bitcast_convert_type(x, jnp.float32)        # [B, D, 2]
    except Exception:
        # Fallback: one fused interleave copy (still a single input stream).
        planes = jnp.stack([jnp.real(x), jnp.imag(x)], axis=-1)      # [B, D, 2]
    return planes.reshape(b, 2 * d)


def _pick_tile_rows(batch, two_d):
    """Largest batch tile whose 3 double-buffered f32 input blocks (+ tiny output)
    fit the default scoped-VMEM budget on every generation (v5e's 16 MiB is the
    smallest); capped at 512 rows."""
    budget_bytes = 12 * 1024 * 1024
    bytes_per_row = 3 * 2 * two_d * 4 + 2 * 4
    tb = min(512, budget_bytes // max(bytes_per_row, 1))
    tb -= tb % 8
    tb = max(tb, 8)
    return batch if batch <= tb else tb


class TripletMarginWithComplexDistanceLoss:
    """JAX/Pallas port of the PyTorch module (forward pass only)."""

    def __init__(self, dist: str, margin: float = 1.0, swap: bool = False,
                 reduction: str = 'mean'):
        if reduction not in ('mean', 'sum', 'none'):
            raise ValueError(f'{reduction} is not a valid value for reduction')
        if dist != 'cosine_l2_norm':
            # TODO(synk): dist='cosine_ang' needs a complex acos of a complex cosine
            # similarity; Pallas TPU has no complex dtype, so only 'cosine_l2_norm'
            # is implemented.
            raise NotImplementedError("only dist='cosine_l2_norm' is implemented")
        self.dist = dist
        self.margin = float(margin)
        self.swap = bool(swap)
        self.reduction = reduction

    def __call__(self, anchor, positive, negative):
        if not (anchor.ndim == positive.ndim == negative.ndim):
            raise RuntimeError(
                'The anchor, positive, and negative tensors are expected to have '
                f'the same number of dimensions, but got: anchor {anchor.ndim}D, '
                f'positive {positive.ndim}D, and negative {negative.ndim}D inputs')
        if anchor.ndim != 2:
            raise ValueError('expected 2-D [batch, features] inputs')

        a = _interleaved_f32(anchor)
        p = _interleaved_f32(positive)
        n = _interleaved_f32(negative)

        batch, two_d = a.shape
        tb = _pick_tile_rows(batch, two_d)
        num_tiles = pl.cdiv(batch, tb)

        kernel = functools.partial(
            _triplet_l2norm_kernel,
            margin=self.margin, swap=self.swap, eps=1e-6,
            batch=batch, block_rows=tb)

        per_row = pl.pallas_call(
            kernel,
            out_shape=jax.ShapeDtypeStruct((batch, 1), jnp.float32),
            grid_spec=pltpu.PrefetchScalarGridSpec(
                num_scalar_prefetch=0,
                grid=(num_tiles,),
                in_specs=[pl.BlockSpec((tb, two_d), lambda i: (i, 0))
                          for _ in range(3)],
                out_specs=pl.BlockSpec((tb, 1), lambda i: (i, 0)),
            ),
            compiler_params=pltpu.CompilerParams(
                dimension_semantics=("parallel",)),
        )(a, p, n)

        loss = per_row[:, 0]
        if self.reduction == 'mean':
            return jnp.sum(loss) / batch     # true-B divisor (ragged tiles masked)
        if self.reduction == 'sum':
            return jnp.sum(loss)
        return loss


def _reference_loss(a, p, n, margin=1.0, swap=False, reduction='mean'):
    """Pure-JAX reference matching the PyTorch forward (cosine_l2_norm)."""
    def dist(x1, x2):
        x1 = jnp.abs(x1)
        x2 = jnp.abs(x2)
        m1 = jnp.linalg.norm(x1, axis=1)
        m2 = jnp.linalg.norm(x2, axis=1)
        n1 = x1 / m1[:, None]
        n2 = x2 / m2[:, None]
        pd = jnp.linalg.norm(n1 - n2 + 1e-6, axis=1)
        return pd ** 2 / 2.0

    dp = dist(a, p)
    dn = dist(a, n)
    if swap:
        dn = jnp.minimum(dn, dist(p, n))
    loss = jnp.maximum(margin + dp - dn, 0.0)
    if reduction == 'mean':
        return jnp.mean(loss)
    if reduction == 'sum':
        return jnp.sum(loss)
    return loss


if __name__ == "__main__":
    B, D = 8, 32
    key = jax.random.PRNGKey(0)
    ks = jax.random.split(key, 6)

    def make_complex(k_re, k_im):
        re = jax.random.normal(k_re, (B, D), dtype=jnp.float32)
        im = jax.random.normal(k_im, (B, D), dtype=jnp.float32)
        return (re + 1j * im).astype(jnp.complex64)

    anchor = make_complex(ks[0], ks[1])
    positive = make_complex(ks[2], ks[3])
    negative = make_complex(ks[4], ks[5])

    configs = [
        dict(margin=1.0, swap=False, reduction='mean'),
        dict(margin=1.0, swap=True, reduction='mean'),
        dict(margin=0.5, swap=False, reduction='none'),
    ]
    for cfg in configs:
        loss_fn = TripletMarginWithComplexDistanceLoss(dist='cosine_l2_norm', **cfg)
        out = jax.block_until_ready(loss_fn(anchor, positive, negative))
        ref = _reference_loss(anchor, positive, negative, **cfg)
        assert jnp.allclose(out, ref, rtol=1e-5, atol=1e-5), (cfg, out, ref)

    print("KERNEL_OK")
</pallas_src>

<mosaic_0001>
module attributes {stable_mosaic.version = 11 : i64} {
  func.func @_triplet_l2norm_kernel(%arg0: i32, %arg1: memref<8x64xf32, #tpu.memory_space<vmem>>, %arg2: memref<8x64xf32, #tpu.memory_space<vmem>>, %arg3: memref<8x64xf32, #tpu.memory_space<vmem>>, %arg4: memref<8x1xf32, #tpu.memory_space<vmem>>) attributes {dimension_semantics = [#tpu.dimension_semantics<parallel>], iteration_bounds = array<i64: 1>, scalar_prefetch = 0 : i64, scratch_operands = 0 : i64, tpu.core_type = #tpu.core_type<tc>, window_params = [{transform_indices = @transform_0, window_bounds = array<i64: 8, 64>}, {transform_indices = @transform_1, window_bounds = array<i64: 8, 64>}, {transform_indices = @transform_2, window_bounds = array<i64: 8, 64>}, {transform_indices = @transform_3, window_bounds = array<i64: 8, 1>}]} {
    %0 = tpu.iota {dimensions = array<i32: 1>} : vector<8x64xi32>
    %c1_i32 = arith.constant 1 : i32
    %1 = tpu.dynamic_rotate %0 by %c1_i32 dim 1 : vector<8x64xi32>, i32 -> vector<8x64xi32>
    %c1_i32_0 = arith.constant 1 : i32
    %2 = vector.broadcast %c1_i32_0 : i32 to vector<8x64xi32>
    %3 = arith.xori %0, %2 : vector<8x64xi32>
    %4 = arith.cmpi eq, %1, %3 : vector<8x64xi32>
    %cst = arith.constant 9.99999997E-7 : f32
    %cst_1 = arith.constant 0.000000e+00 : f32
    %5 = vector.broadcast %cst : f32 to vector<8x64xf32>
    %6 = vector.broadcast %cst_1 : f32 to vector<8x64xf32>
    %7 = arith.select %4, %5, %6 : vector<8x64xi1>, vector<8x64xf32>
    %c0 = arith.constant 0 : index
    %c0_2 = arith.constant 0 : index
    %8 = vector.load %arg1[%c0, %c0_2] : memref<8x64xf32, #tpu.memory_space<vmem>>, vector<8x64xf32>
    %9 = arith.mulf %8, %8 : vector<8x64xf32>
    %c1_i32_3 = arith.constant 1 : i32
    %10 = tpu.dynamic_rotate %9 by %c1_i32_3 dim 1 : vector<8x64xf32>, i32 -> vector<8x64xf32>
    %11 = arith.addf %9, %10 : vector<8x64xf32>
    %12 = math.sqrt %11 : vector<8x64xf32>
    %cst_4 = arith.constant 0.000000e+00 : f32
    %13 = vector.broadcast %cst_4 : f32 to vector<8x64xf32>
    %14 = arith.select %4, %12, %13 : vector<8x64xi1>, vector<8x64xf32>
    %cst_5 = arith.constant dense<0.000000e+00> : vector<8xf32>
    %15 = vector.multi_reduction <add>, %9, %cst_5 [1] : vector<8x64xf32> to vector<8xf32>
    %16 = vector.shape_cast %15 : vector<8xf32> to vector<8x1xf32>
    %17 = math.rsqrt %16 : vector<8x1xf32>
    %18 = vector.broadcast %17 : vector<8x1xf32> to vector<8x64xf32>
    %19 = arith.mulf %14, %18 : vector<8x64xf32>
    %c0_6 = arith.constant 0 : index
    %c0_7 = arith.constant 0 : index
    %20 = vector.load %arg2[%c0_6, %c0_7] : memref<8x64xf32, #tpu.memory_space<vmem>>, vector<8x64xf32>
    %21 = arith.mulf %20, %20 : vector<8x64xf32>
    %c1_i32_8 = arith.constant 1 : i32
    %22 = tpu.dynamic_rotate %21 by %c1_i32_8 dim 1 : vector<8x64xf32>, i32 -> vector<8x64xf32>
    %23 = arith.addf %21, %22 : vector<8x64xf32>
    %24 = math.sqrt %23 : vector<8x64xf32>
    %cst_9 = arith.constant 0.000000e+00 : f32
    %25 = vector.broadcast %cst_9 : f32 to vector<8x64xf32>
    %26 = arith.select %4, %24, %25 : vector<8x64xi1>, vector<8x64xf32>
    %cst_10 = arith.constant dense<0.000000e+00> : vector<8xf32>
    %27 = vector.multi_reduction <add>, %21, %cst_10 [1] : vector<8x64xf32> to vector<8xf32>
    %28 = vector.shape_cast %27 : vector<8xf32> to vector<8x1xf32>
    %29 = math.rsqrt %28 : vector<8x1xf32>
    %30 = vector.broadcast %29 : vector<8x1xf32> to vector<8x64xf32>
    %31 = arith.mulf %26, %30 : vector<8x64xf32>
    %c0_11 = arith.constant 0 : index
    %c0_12 = arith.constant 0 : index
    %32 = vector.load %arg3[%c0_11, %c0_12] : memref<8x64xf32, #tpu.memory_space<vmem>>, vector<8x64xf32>
    %33 = arith.mulf %32, %32 : vector<8x64xf32>
    %c1_i32_13 = arith.constant 1 : i32
    %34 = tpu.dynamic_rotate %33 by %c1_i32_13 dim 1 : vector<8x64xf32>, i32 -> vector<8x64xf32>
    %35 = arith.addf %33, %34 : vector<8x64xf32>
    %36 = math.sqrt %35 : vector<8x64xf32>
    %cst_14 = arith.constant 0.000000e+00 : f32
    %37 = vector.broadcast %cst_14 : f32 to vector<8x64xf32>
    %38 = arith.select %4, %36, %37 : vector<8x64xi1>, vector<8x64xf32>
    %cst_15 = arith.constant dense<0.000000e+00> : vector<8xf32>
    %39 = vector.multi_reduction <add>, %33, %cst_15 [1] : vector<8x64xf32> to vector<8xf32>
    %40 = vector.shape_cast %39 : vector<8xf32> to vector<8x1xf32>
    %41 = math.rsqrt %40 : vector<8x1xf32>
    %42 = vector.broadcast %41 : vector<8x1xf32> to vector<8x64xf32>
    %43 = arith.mulf %38, %42 : vector<8x64xf32>
    %44 = arith.subf %19, %31 : vector<8x64xf32>
    %45 = arith.addf %44, %7 : vector<8x64xf32>
    %46 = arith.mulf %45, %45 : vector<8x64xf32>
    %cst_16 = arith.constant dense<0.000000e+00> : vector<8xf32>
    %47 = vector.multi_reduction <add>, %46, %cst_16 [1] : vector<8x64xf32> to vector<8xf32>
    %48 = vector.shape_cast %47 : vector<8xf32> to vector<8x1xf32>
    %cst_17 = arith.constant 5.000000e-01 : f32
    %49 = vector.broadcast %cst_17 : f32 to vector<8x1xf32>
    %50 = arith.mulf %49, %48 : vector<8x1xf32>
    %51 = arith.subf %19, %43 : vector<8x64xf32>
    %52 = arith.addf %51, %7 : vector<8x64xf32>
    %53 = arith.mulf %52, %52 : vector<8x64xf32>
    %cst_18 = arith.constant dense<0.000000e+00> : vector<8xf32>
    %54 = vector.multi_reduction <add>, %53, %cst_18 [1] : vector<8x64xf32> to vector<8xf32>
    %55 = vector.shape_cast %54 : vector<8xf32> to vector<8x1xf32>
    %cst_19 = arith.constant 5.000000e-01 : f32
    %56 = vector.broadcast %cst_19 : f32 to vector<8x1xf32>
    %57 = arith.mulf %56, %55 : vector<8x1xf32>
    %cst_20 = arith.constant 1.000000e+00 : f32
    %58 = vector.broadcast %cst_20 : f32 to vector<8x1xf32>
    %59 = arith.addf %58, %50 : vector<8x1xf32>
    %60 = arith.subf %59, %57 : vector<8x1xf32>
    %cst_21 = arith.constant 0.000000e+00 : f32
    %61 = vector.broadcast %cst_21 : f32 to vector<8x1xf32>
    %62 = arith.maximumf %60, %61 : vector<8x1xf32>
    %c8_i32 = arith.constant 8 : i32
    %63 = arith.muli %arg0, %c8_i32 : i32
    %64 = tpu.iota {dimensions = array<i32: 0>} : vector<8x1xi32>
    %65 = vector.broadcast %63 : i32 to vector<8x1xi32>
    %66 = arith.addi %65, %64 : vector<8x1xi32>
    %c8_i32_22 = arith.constant 8 : i32
    %67 = vector.broadcast %c8_i32_22 : i32 to vector<8x1xi32>
    %68 = arith.cmpi slt, %66, %67 : vector<8x1xi32>
    %cst_23 = arith.constant 0.000000e+00 : f32
    %69 = vector.broadcast %cst_23 : f32 to vector<8x1xf32>
    %70 = arith.select %68, %62, %69 : vector<8x1xi1>, vector<8x1xf32>
    %c0_24 = arith.constant 0 : index
    %c0_25 = arith.constant 0 : index
    %71 = vector.load %arg4[%c0_24, %c0_25] : memref<8x1xf32, #tpu.memory_space<vmem>>, vector<8x1xf32>
    tpu.vector_store %arg4[%c0_24, %c0_25], %70 {strides = array<i32>} : memref<8x1xf32, #tpu.memory_space<vmem>>, vector<8x1xf32>,
    return
  }
  func.func @transform_0(%arg0: i32) -> (i32, i32) {
    %c0_i32 = arith.constant 0 : i32
    %c0_i32_0 = arith.constant 0 : i32
    return %arg0, %c0_i32 : i32, i32
  }
  func.func @transform_1(%arg0: i32) -> (i32, i32) {
    %c0_i32 = arith.constant 0 : i32
    %c0_i32_0 = arith.constant 0 : i32
    return %arg0, %c0_i32 : i32, i32
  }
  func.func @transform_2(%arg0: i32) -> (i32, i32) {
    %c0_i32 = arith.constant 0 : i32
    %c0_i32_0 = arith.constant 0 : i32
    return %arg0, %c0_i32 : i32, i32
  }
  func.func @transform_3(%arg0: i32) -> (i32, i32) {
    %c0_i32 = arith.constant 0 : i32
    %c0_i32_0 = arith.constant 0 : i32
    return %arg0, %c0_i32 : i32, i32
  }
}

</mosaic_0001>

<llo_original>
// kernel: tpu_custom_call.1
$region0: #{tpu_custom_call.1}
  #allocation0 [shape = 'u32[]', space=smem, size = 0x4, offset = 0x4, fixed_abs, tag = 'smem constant byte address 0x4 - core index']
  #allocation1 [shape = 'u32[144,128]{1,0:T(1,128)}', space=vmem, size = 0x12000, scoped, tag = 'internal scratch']
  %s0 = inlined_call_operand.hbm [shape: f32[8,64], index: 0, kind: input, shape index: {}]
  %s1 = inlined_call_operand.hbm [shape: f32[8,64], index: 1, kind: input, shape index: {}]
  %s2 = inlined_call_operand.hbm [shape: f32[8,64], index: 2, kind: input, shape index: {}]
  %s3 = inlined_call_operand.vmem [shape: f32[8,1], index: 3, kind: output, shape index: {}]
  %s4 = sld [smem:[#allocation0]]
  $region34: #{tpu_custom_call.1} parent=0
    _
  %s6 = ssub.s32 1, %s4
  %s7 = scalar_select 0, %s6, %s4
  $region1: #{tpu_custom_call.1} parent=0
    #allocation2 [shape = 'u8[4096]{0}', space=vmem, size = 0x1000, scoped, tag = 'input window, operand 0, single buffered']
    #allocation3 [shape = 's32[1]{0}', space=sflag, size = 0x4, scoped, tag = 'scoped memory for tpu_custom_call.1']
    #allocation4 [shape = 'u8[4096]{0}', space=vmem, size = 0x1000, scoped, tag = 'input window, operand 1, single buffered']
    #allocation5 [shape = 's32[1]{0}', space=sflag, size = 0x4, scoped, tag = 'scoped memory for tpu_custom_call.1']
    #allocation6 [shape = 'u8[4096]{0}', space=vmem, size = 0x1000, scoped, tag = 'input window, operand 2, single buffered']
    %8 = vsyncpa [#allocation3], 0
    %9 = vsyncpa [#allocation5], 0
    // Predicated region
    $region2: #{tpu_custom_call.1} parent=1 // pred_check
      _
    $region3: #{tpu_custom_call.1} parent=1 // pred_check_branch
      %11 = sbr.rel (0) target = $region5
    $region4: #{tpu_custom_call.1} parent=1 // pred_region
      %s13 = ssub.s32 128, 128
      %14 = vsyncadd [#allocation3], %s13
      %s16 = sshll.u32 [#allocation2], 4
      %s17 = int_to_ptr.vmem [resolvable:$true] %s16
      %19 = dma.hbm_to_vmem [thread:$0]  %s0, 128, %s17, [#allocation3]
    $region5: #{tpu_custom_call.1} parent=1 // pred_fallthru
      _
    // Predicated region
    $region6: #{tpu_custom_call.1} parent=1 // pred_check
      _
    $region7: #{tpu_custom_call.1} parent=1 // pred_check_branch
      %21 = sbr.rel (0) target = $region9
    $region8: #{tpu_custom_call.1} parent=1 // pred_region
      %s23 = ssub.s32 128, 128
      %24 = vsyncadd [#allocation5], %s23
      %s26 = sshll.u32 [#allocation4], 4
      %s27 = int_to_ptr.vmem [resolvable:$true] %s26
      %29 = dma.hbm_to_vmem [thread:$0]  %s1, 128, %s27, [#allocation5]
    $region9: #{tpu_custom_call.1} parent=1 // pred_fallthru
      _
    // Predicated region
    $region10: #{tpu_custom_call.1} parent=1 // pred_check
      _
    $region11: #{tpu_custom_call.1} parent=1 // pred_check_branch
      %31 = sbr.rel (0) target = $region13
    $region12: #{tpu_custom_call.1} parent=1 // pred_region
      %s33 = ssub.s32 128, 128
      %34 = vsyncadd [#allocation5], %s33
      %s36 = sshll.u32 [#allocation6], 4
      %s37 = int_to_ptr.vmem [resolvable:$true] %s36
      %39 = dma.hbm_to_vmem [thread:$0]  %s2, 128, %s37, [#allocation5]
    $region13: #{tpu_custom_call.1} parent=1 // pred_fallthru
      _
    // Predicated region
    $region14: #{tpu_custom_call.1} parent=1 // pred_check
      _
    $region15: #{tpu_custom_call.1} parent=1 // pred_check_branch
      %41 = sbr.rel (0) target = $region17
    $region16: #{tpu_custom_call.1} parent=1 // pred_region
      %42 = dma.done [#allocation3], 128
    $region17: #{tpu_custom_call.1} parent=1 // pred_fallthru
      _
    // Predicated region
    $region18: #{tpu_custom_call.1} parent=1 // pred_check
      _
    $region19: #{tpu_custom_call.1} parent=1 // pred_check_branch
      %44 = sbr.rel (0) target = $region21
    $region20: #{tpu_custom_call.1} parent=1 // pred_region
      %45 = dma.done [#allocation5], 128
    $region21: #{tpu_custom_call.1} parent=1 // pred_fallthru
      _
    // Predicated region
    $region22: #{tpu_custom_call.1} parent=1 // pred_check
      _
    $region23: #{tpu_custom_call.1} parent=1 // pred_check_branch
      %47 = sbr.rel (0) target = $region25
    $region24: #{tpu_custom_call.1} parent=1 // pred_region
      %48 = dma.done [#allocation5], 128
    $region25: #{tpu_custom_call.1} parent=1 // pred_fallthru
      _
    %v49 = vlaneseq
    %v50 = vand.u32 %v49, 127
    %vm51 = vcmask 1048064
    %52 = vrot.lane.b32.xlu0 %v50, 64
    %v53 = vpop.permute.xlu0 %52
    %v54 = vsel %vm51, %v53, %v50
    %55 = vrot.lane.b32.xlu0 %v54, 64
    %v56 = vpop.permute.xlu0 %55
    %v57 = vsel %vm51, %v56, %v50
    %v58 = vxor.u32 %v50, 1
    %59 = vrot.lane.b32.xlu0 %v58, 63
    %v60 = vpop.permute.xlu0 %59
    %vm61 = vcmp.eq.s32.totalorder %v57, %v60
    %v62 = vsel %vm61, 1e-06, 0.0
    %v63 = vld [vmem:[#allocation2] sm:$0xff]
    %v64 = vmul.f32 %v63, %v63
    %65 = vrot.lane.b32.xlu0 %v64, 64
    %v66 = vpop.permute.xlu0 %65
    %v67 = vsel %vm51, %v66, %v64
    %68 = vrot.lane.b32.xlu0 %v67, 64
    %v69 = vpop.permute.xlu0 %68
    %v70 = vsel %vm51, %v69, %v64
    %72 = vrot.lane.b32.xlu0 %v70, 65
    %v73 = vpop.permute.xlu0 %72
    %v75 = vadd.f32 %v64, %v73
    %v76 = vrsqrt.pop %v75
    %v77 = vmul.f32 %v75, %v76
    %vm78 = vcmp.eq.f32.partialorder %v75, inf
    %v79 = vsel %vm78, %v75, %v77
    %vm80 = vcmp.eq.f32.partialorder %v75, 0.0
    %v81 = vand.u32 %v75, 2147483648
    %v82 = vsel %vm80, %v81, %v79
    %84 = vrot.lane.b32.xlu0 %v82, 63
    %v85 = vpop.permute.xlu0 %84
    %v87 = vsel %vm61, %v85, 0.0
    %vm88 = vcmask 523264
    %v89 = vsel %vm88, %v64, 0.0
    %90 = vadd.xlane.f32.xlu0 %v89
    %v91 = vpop.xlane.xlu0 %90
    %v92 = vrsqrt.pop %v91
    %v93 = vmul.f32 %v87, %v92
    %v94 = vld [vmem:[#allocation4] sm:$0xff]
    %v95 = vmul.f32 %v94, %v94
    %96 = vrot.lane.b32.xlu0 %v95, 64
    %v97 = vpop.permute.xlu0 %96
    %v98 = vsel %vm51, %v97, %v95
    %99 = vrot.lane.b32.xlu0 %v98, 64
    %v100 = vpop.permute.xlu0 %99
    %v101 = vsel %vm51, %v100, %v95
    %103 = vrot.lane.b32.xlu0 %v101, 65
    %v104 = vpop.permute.xlu0 %103
    %v106 = vadd.f32 %v95, %v104
    %v107 = vrsqrt.pop %v106
    %v108 = vmul.f32 %v106, %v107
    %vm109 = vcmp.eq.f32.partialorder %v106, inf
    %v110 = vsel %vm109, %v106, %v108
    %vm111 = vcmp.eq.f32.partialorder %v106, 0.0
    %v112 = vand.u32 %v106, 2147483648
    %v113 = vsel %vm111, %v112, %v110
    %115 = vrot.lane.b32.xlu0 %v113, 63
    %v116 = vpop.permute.xlu0 %115
    %v118 = vsel %vm61, %v116, 0.0
    %v119 = vsel %vm88, %v95, 0.0
    %120 = vadd.xlane.f32.xlu0 %v119
    %v121 = vpop.xlane.xlu0 %120
    %v122 = vrsqrt.pop %v121
    %v123 = vmul.f32 %v118, %v122
    %v124 = vld [vmem:[#allocation6] sm:$0xff]
    %v125 = vmul.f32 %v124, %v124
    %126 = vrot.lane.b32.xlu0 %v125, 64
    %v127 = vpop.permute.xlu0 %126
    %v128 = vsel %vm51, %v127, %v125
    %129 = vrot.lane.b32.xlu0 %v128, 64
    %v130 = vpop.permute.xlu0 %129
    %v131 = vsel %vm51, %v130, %v125
    %133 = vrot.lane.b32.xlu0 %v131, 65
    %v134 = vpop.permute.xlu0 %133
    %v136 = vadd.f32 %v125, %v134
    %v137 = vrsqrt.pop %v136
    %v138 = vmul.f32 %v136, %v137
    %vm139 = vcmp.eq.f32.partialorder %v136, inf
    %v140 = vsel %vm139, %v136, %v138
    %vm141 = vcmp.eq.f32.partialorder %v136, 0.0
    %v142 = vand.u32 %v136, 2147483648
    %v143 = vsel %vm141, %v142, %v140
    %145 = vrot.lane.b32.xlu0 %v143, 63
    %v146 = vpop.permute.xlu0 %145
    %v148 = vsel %vm61, %v146, 0.0
    %v149 = vsel %vm88, %v125, 0.0
    %150 = vadd.xlane.f32.xlu0 %v149
    %v151 = vpop.xlane.xlu0 %150
    %v152 = vrsqrt.pop %v151
    %v153 = vmul.f32 %v148, %v152
    %v154 = vsub.f32 %v93, %v123
    %v155 = vadd.f32 %v154, %v62
    %v156 = vmul.f32 %v155, %v155
    %158 = vrot.lane.b32.xlu0 %v156, 65
    %v159 = vpop.permute.xlu0 %158
    %v161 = vsel %vm88, %v159, 0.0
    %162 = vadd.xlane.f32.xlu0 %v161
    %v163 = vpop.xlane.xlu0 %162
    %v164 = vmul.f32 %v163, 0.5
    %v165 = vsub.f32 %v93, %v153
    %v166 = vadd.f32 %v165, %v62
    %v167 = vmul.f32 %v166, %v166
    %169 = vrot.lane.b32.xlu0 %v167, 65
    %v170 = vpop.permute.xlu0 %169
    %v172 = vsel %vm88, %v170, 0.0
    %173 = vadd.xlane.f32.xlu0 %v172
    %v174 = vpop.xlane.xlu0 %173
    %v175 = vmul.f32 %v174, 0.5
    %v176 = vadd.f32 %v164, 1.0
    %v177 = vsub.f32 %v176, %v175
    %v178 = vmax.f32 %v177, 0.0
    %s179 = smul.u32 0, 8
    %v180 = vlaneseq
    %v181 = vshrl.u32 %v180, 7
    %v182 = vstv %s179
    %v183 = vadd.s32 %v182, %v181
    %vm184 = vcmp.lt.s32.totalorder %v183, 8
    %v185 = vsel %vm184, %v178, 0.0
    %vm186 = vcmask 7168
    %187 = vst.msk [vmem:[%s3] sm:$0xff] %vm186, %v185
    // Predicated region
    $region26: #{tpu_custom_call.1} parent=1 // pred_check
      _
    $region27: #{tpu_custom_call.1} parent=1 // pred_check_branch
      %189 = sbr.rel (0) target = $region29
    $region28: #{tpu_custom_call.1} parent=1 // pred_region
      _
    $region29: #{tpu_custom_call.1} parent=1 // pred_fallthru
      _
    // Predicated region
    $region30: #{tpu_custom_call.1} parent=1 // pred_check
      _
    $region31: #{tpu_custom_call.1} parent=1 // pred_check_branch
      %191 = sbr.rel (0) target = $region33
    $region32: #{tpu_custom_call.1} parent=1 // pred_region
      _
    $region33: #{tpu_custom_call.1} parent=1 // pred_fallthru
      _
    %192 = vsyncpa [#allocation3], 1
    %193 = vsyncpa [#allocation5], 1

</llo_original>
